<compile_context>
chip_gen: v6e
topology: v6e:2x2x1
jax: 0.10.0
libtpu: 0.0.40
codegen_flags: <defaults>
</compile_context>

<pallas_src>
import jax
import jax.numpy as jnp
from jax.experimental import pallas as pl
from jax.experimental.pallas import tpu as pltpu


_VMEM = pl.BlockSpec(memory_space=pltpu.MemorySpace.VMEM)
_SMEM = pl.BlockSpec(memory_space=pltpu.MemorySpace.SMEM)
_LANE = 128  # lane-dense output width


# ---------------------------------------------------------------------------
# Fused kernel: conv1 -> relu -> conv2 -> log_softmax -> dot-product predictor
# ---------------------------------------------------------------------------
def _fused_net_kernel(edge_ref, a_ref, x_ref, w1_ref, w2_ref, bias_ref,
                      out_ref, logp_ref):
    n, c = logp_ref.shape
    num_edges = edge_ref.shape[1]

    # ---- layer 1: h = relu(A_hat @ (X @ W1) + b1)   (bf16 MXU, f32 acc) ----
    xw1 = jnp.dot(x_ref[...], w1_ref[...], preferred_element_type=jnp.float32)
    z1 = jnp.dot(a_ref[...], xw1.astype(jnp.bfloat16),
                 preferred_element_type=jnp.float32)
    h = jnp.maximum(z1 + bias_ref[0:1, :], 0.0)
    # TODO(synk): F.dropout is identity in eval mode; training-mode dropout omitted.

    # ---- layer 2: z2 = A_hat @ (h @ W2) + b2 ----
    hw2 = jnp.dot(h.astype(jnp.bfloat16), w2_ref[...],
                  preferred_element_type=jnp.float32)
    z2 = jnp.dot(a_ref[...], hw2.astype(jnp.bfloat16),
                 preferred_element_type=jnp.float32)
    z2 = z2 + bias_ref[1:2, 0:c]

    # ---- log_softmax over the class axis (f32) ----
    if c == 2:
        # width-2 class axis: stay fully elementwise, no generic XLU reduce
        za = z2[:, 0:1]
        zb = z2[:, 1:2]
        m = jnp.maximum(za, zb)
        lse = m + jnp.log(jnp.exp(za - m) + jnp.exp(zb - m))
    else:
        m = jnp.max(z2, axis=-1, keepdims=True)
        lse = m + jnp.log(jnp.sum(jnp.exp(z2 - m), axis=-1, keepdims=True))
    logp_ref[...] = z2 - lse  # keep in VMEM scratch for the gather below

    # ---- DotProductPredictor: out[e, :] = -logp[src[e], :] * logp[dst[e], :]
    # Lane-dense (E, 128) output slab; only the first C lanes are meaningful.
    out_ref[...] = jnp.zeros_like(out_ref)

    @pl.loop(0, num_edges)
    def _(e):
        s = edge_ref[0, e]          # SMEM scalar reads
        d = edge_ref[1, e]
        hs = logp_ref[pl.ds(s, 1), :]   # (1, C) dynamic sublane gather
        hd = logp_ref[pl.ds(d, 1), :]
        out_ref[pl.ds(e, 1), 0:c] = -(hs * hd)


# ---------------------------------------------------------------------------
# Plain-JAX glue: normalized adjacency (PyG GCNConv, normalize=True)
# ---------------------------------------------------------------------------
def build_normalized_adjacency(edge_index, edge_weight, num_nodes):
    src, dst = edge_index[0], edge_index[1]
    a = jnp.zeros((num_nodes, num_nodes), jnp.float32)
    # PyG GCNConv propagates src -> dst:  out[dst] += norm * x[src]
    a = a.at[dst, src].add(edge_weight)
    a = a + jnp.eye(num_nodes, dtype=jnp.float32)        # self loops, weight 1
    deg = jnp.sum(a, axis=1)
    dinv = jnp.where(deg > 0, jax.lax.rsqrt(deg), 0.0)
    return a * dinv[:, None] * dinv[None, :]


def net_forward(x, edge_index, edge_weight, line_edges, params):
    n = x.shape[0]
    hidden = params["w1"].shape[1]
    c = params["w2"].shape[1]
    e = line_edges.shape[1]

    a_hat = build_normalized_adjacency(edge_index, edge_weight, n)

    # pack both biases into one tiny f32 VMEM input (row 0 = b1, row 1 = b2)
    bias = jnp.zeros((2, hidden), jnp.float32)
    bias = bias.at[0, :].set(params["b1"].reshape(-1))
    bias = bias.at[1, :c].set(params["b2"].reshape(-1))

    # TODO(synk): at toy N the whole problem fits in VMEM; for large graphs add
    # a node-row grid (parallel dimension_semantics) and tile A_hat to respect
    # v7x's 64 MiB VMEM / use its second TensorCore.
    out_pad = pl.pallas_call(
        _fused_net_kernel,
        out_shape=jax.ShapeDtypeStruct((e, _LANE), jnp.float32),
        in_specs=[_SMEM, _VMEM, _VMEM, _VMEM, _VMEM, _VMEM],
        out_specs=_VMEM,
        scratch_shapes=[pltpu.VMEM((n, c), jnp.float32)],
    )(
        line_edges.astype(jnp.int32),
        a_hat.astype(jnp.bfloat16),
        x.astype(jnp.bfloat16),
        params["w1"].astype(jnp.bfloat16),
        params["w2"].astype(jnp.bfloat16),
        bias,
    )
    return out_pad[:, :c]


# ---------------------------------------------------------------------------
# Main
# ---------------------------------------------------------------------------
if __name__ == "__main__":
    key = jax.random.PRNGKey(0)

    NUM_NODES = 32
    NUM_FEATURES = 8
    HIDDEN = 16           # GCNConv(num_features, 16)
    NUM_CLASSES = 2       # DotProductPredictor's torch.tensor([-1, -1])
    NUM_EDGES = 64
    NUM_LINE_EDGES = 48

    keys = jax.random.split(key, 6)

    x = jax.random.normal(keys[0], (NUM_NODES, NUM_FEATURES), jnp.float32)
    edge_index = jax.random.randint(keys[1], (2, NUM_EDGES), 0, NUM_NODES, jnp.int32)
    edge_weight = jax.random.uniform(keys[2], (NUM_EDGES,), jnp.float32, 0.1, 1.0)
    # line-graph edge list used by DotProductPredictor (synthetic, replaces files)
    line_edges = jax.random.randint(
        keys[3], (2, NUM_LINE_EDGES), 0, NUM_NODES, jnp.int32
    )

    params = {
        "w1": jax.random.normal(keys[4], (NUM_FEATURES, HIDDEN), jnp.float32)
        * (1.0 / jnp.sqrt(NUM_FEATURES)),
        "b1": jnp.zeros((HIDDEN,), jnp.float32),
        "w2": jax.random.normal(keys[5], (HIDDEN, NUM_CLASSES), jnp.float32)
        * (1.0 / jnp.sqrt(HIDDEN)),
        "b2": jnp.zeros((NUM_CLASSES,), jnp.float32),
    }

    out = jax.jit(net_forward)(x, edge_index, edge_weight, line_edges, params)
    out = jax.block_until_ready(out)
    assert out.shape == (NUM_LINE_EDGES, NUM_CLASSES), out.shape
    assert bool(jnp.all(jnp.isfinite(out))), "non-finite output"
    print("KERNEL_OK")
</pallas_src>

<mosaic_0001>
module attributes {stable_mosaic.version = 11 : i64} {
  func.func private @main(%arg0: i32) attributes {dimension_semantics = [#tpu.dimension_semantics<core_parallel>], iteration_bounds = array<i64: 2>, tpu.core_type = #tpu.core_type<sc_scalar_subcore>, window_params = []} {
    return
  }
}

module attributes {stable_mosaic.version = 11 : i64} {
  func.func private @main(%arg0: i32) attributes {dimension_semantics = [#tpu.dimension_semantics<core_parallel>], iteration_bounds = array<i64: 2>, tpu.core_type = #tpu.core_type<sc_scalar_subcore>, window_params = []} {
    return
  }
}

module attributes {stable_mosaic.version = 11 : i64} {
  func.func @_fused_net_kernel(%arg0: memref<2x48xi32, #tpu.memory_space<smem>>, %arg1: memref<32x32xbf16, #tpu.memory_space<vmem>>, %arg2: memref<32x8xbf16, #tpu.memory_space<vmem>>, %arg3: memref<8x16xbf16, #tpu.memory_space<vmem>>, %arg4: memref<16x2xbf16, #tpu.memory_space<vmem>>, %arg5: memref<2x16xf32, #tpu.memory_space<vmem>>, %arg6: memref<48x128xf32, #tpu.memory_space<vmem>>, %arg7: memref<32x2xf32, #tpu.memory_space<vmem>>) attributes {dimension_semantics = [], scalar_prefetch = 0 : i64, scratch_operands = 1 : i64, tpu.core_type = #tpu.core_type<tc>} {
    %c0 = arith.constant 0 : index
    %c0_0 = arith.constant 0 : index
    %0 = vector.load %arg2[%c0, %c0_0] : memref<32x8xbf16, #tpu.memory_space<vmem>>, vector<32x8xbf16>
    %c0_1 = arith.constant 0 : index
    %c0_2 = arith.constant 0 : index
    %1 = vector.load %arg3[%c0_1, %c0_2] : memref<8x16xbf16, #tpu.memory_space<vmem>>, vector<8x16xbf16>
    %cst = arith.constant dense<0.000000e+00> : vector<32x16xf32>
    %2 = tpu.matmul %0, %1, %cst {dimension_numbers = #tpu.dot_dimension_numbers<[1], [0], [0], [1], [0, 0, 1, 1], [], []>} : vector<32x8xbf16>, vector<8x16xbf16>, vector<32x16xf32> -> vector<32x16xf32>
    %c0_3 = arith.constant 0 : index
    %c0_4 = arith.constant 0 : index
    %3 = vector.load %arg1[%c0_3, %c0_4] : memref<32x32xbf16, #tpu.memory_space<vmem>>, vector<32x32xbf16>
    %4 = arith.truncf %2 : vector<32x16xf32> to vector<32x16xbf16>
    %cst_5 = arith.constant dense<0.000000e+00> : vector<32x16xf32>
    %5 = tpu.matmul %3, %4, %cst_5 {dimension_numbers = #tpu.dot_dimension_numbers<[1], [0], [0], [1], [0, 0, 1, 1], [], []>} : vector<32x32xbf16>, vector<32x16xbf16>, vector<32x16xf32> -> vector<32x16xf32>
    %c0_6 = arith.constant 0 : index
    %c0_7 = arith.constant 0 : index
    %6 = vector.load %arg5[%c0_6, %c0_7] : memref<2x16xf32, #tpu.memory_space<vmem>>, vector<1x16xf32>
    %7 = vector.broadcast %6 : vector<1x16xf32> to vector<32x16xf32>
    %8 = arith.addf %5, %7 : vector<32x16xf32>
    %cst_8 = arith.constant 0.000000e+00 : f32
    %9 = vector.broadcast %cst_8 : f32 to vector<32x16xf32>
    %10 = arith.maximumf %8, %9 : vector<32x16xf32>
    %11 = arith.truncf %10 : vector<32x16xf32> to vector<32x16xbf16>
    %c0_9 = arith.constant 0 : index
    %c0_10 = arith.constant 0 : index
    %12 = vector.load %arg4[%c0_9, %c0_10] : memref<16x2xbf16, #tpu.memory_space<vmem>>, vector<16x2xbf16>
    %cst_11 = arith.constant dense<0.000000e+00> : vector<32x2xf32>
    %13 = tpu.matmul %11, %12, %cst_11 {dimension_numbers = #tpu.dot_dimension_numbers<[1], [0], [0], [1], [0, 0, 1, 1], [], []>} : vector<32x16xbf16>, vector<16x2xbf16>, vector<32x2xf32> -> vector<32x2xf32>
    %c0_12 = arith.constant 0 : index
    %c0_13 = arith.constant 0 : index
    %14 = vector.load %arg1[%c0_12, %c0_13] : memref<32x32xbf16, #tpu.memory_space<vmem>>, vector<32x32xbf16>
    %15 = arith.truncf %13 : vector<32x2xf32> to vector<32x2xbf16>
    %cst_14 = arith.constant dense<0.000000e+00> : vector<32x2xf32>
    %16 = tpu.matmul %14, %15, %cst_14 {dimension_numbers = #tpu.dot_dimension_numbers<[1], [0], [0], [1], [0, 0, 1, 1], [], []>} : vector<32x32xbf16>, vector<32x2xbf16>, vector<32x2xf32> -> vector<32x2xf32>
    %c1 = arith.constant 1 : index
    %c0_15 = arith.constant 0 : index
    %17 = vector.load %arg5[%c1, %c0_15] : memref<2x16xf32, #tpu.memory_space<vmem>>, vector<1x2xf32>
    %18 = vector.broadcast %17 : vector<1x2xf32> to vector<32x2xf32>
    %19 = arith.addf %16, %18 : vector<32x2xf32>
    %20 = vector.extract_strided_slice %19 {offsets = [0, 0], sizes = [32, 1], strides = [1, 1]} : vector<32x2xf32> to vector<32x1xf32>
    %21 = vector.extract_strided_slice %19 {offsets = [0, 1], sizes = [32, 1], strides = [1, 1]} : vector<32x2xf32> to vector<32x1xf32>
    %22 = arith.maximumf %20, %21 : vector<32x1xf32>
    %23 = arith.subf %20, %22 : vector<32x1xf32>
    %24 = math.exp %23 : vector<32x1xf32>
    %25 = arith.subf %21, %22 : vector<32x1xf32>
    %26 = math.exp %25 : vector<32x1xf32>
    %27 = arith.addf %24, %26 : vector<32x1xf32>
    %28 = math.log %27 : vector<32x1xf32>
    %29 = arith.addf %22, %28 : vector<32x1xf32>
    %30 = vector.broadcast %29 : vector<32x1xf32> to vector<32x2xf32>
    %31 = arith.subf %19, %30 : vector<32x2xf32>
    %c0_16 = arith.constant 0 : index
    %c0_17 = arith.constant 0 : index
    %32 = vector.load %arg7[%c0_16, %c0_17] : memref<32x2xf32, #tpu.memory_space<vmem>>, vector<32x2xf32>
    tpu.vector_store %arg7[%c0_16, %c0_17], %31 {strides = array<i32>} : memref<32x2xf32, #tpu.memory_space<vmem>>, vector<32x2xf32>,
    %cst_18 = arith.constant 0.000000e+00 : f32
    %33 = vector.broadcast %cst_18 : f32 to vector<48x128xf32>
    %c0_19 = arith.constant 0 : index
    %c0_20 = arith.constant 0 : index
    %34 = vector.load %arg6[%c0_19, %c0_20] : memref<48x128xf32, #tpu.memory_space<vmem>>, vector<48x128xf32>
    tpu.vector_store %arg6[%c0_19, %c0_20], %33 {strides = array<i32>} : memref<48x128xf32, #tpu.memory_space<vmem>>, vector<48x128xf32>,
    %c0_i32 = arith.constant 0 : i32
    %c48_i32 = arith.constant 48 : i32
    %35 = arith.addi %c0_i32, %c48_i32 : i32
    %c1_i32 = arith.constant 1 : i32
    scf.for %arg8 = %c0_i32 to %35 step %c1_i32  : i32 {
      %c1_i32_22 = arith.constant 1 : i32
      %36 = arith.muli %arg8, %c1_i32_22 : i32
      %c0_i32_23 = arith.constant 0 : i32
      %37 = arith.addi %c0_i32_23, %36 : i32
      %c0_24 = arith.constant 0 : index
      %38 = arith.index_cast %37 : i32 to index
      %39 = memref.load %arg0[%c0_24, %38] : memref<2x48xi32, #tpu.memory_space<smem>>
      %c1_25 = arith.constant 1 : index
      %40 = arith.index_cast %37 : i32 to index
      %41 = memref.load %arg0[%c1_25, %40] : memref<2x48xi32, #tpu.memory_space<smem>>
      %42 = arith.index_cast %39 : i32 to index
      %c0_26 = arith.constant 0 : index
      %43 = vector.load %arg7[%42, %c0_26] : memref<32x2xf32, #tpu.memory_space<vmem>>, vector<1x2xf32>
      %44 = arith.index_cast %41 : i32 to index
      %c0_27 = arith.constant 0 : index
      %45 = vector.load %arg7[%44, %c0_27] : memref<32x2xf32, #tpu.memory_space<vmem>>, vector<1x2xf32>
      %46 = arith.mulf %43, %45 : vector<1x2xf32>
      %cst_28 = arith.constant 0.000000e+00 : f32
      %47 = vector.broadcast %cst_28 : f32 to vector<1x2xf32>
      %48 = arith.subf %47, %46 : vector<1x2xf32>
      %49 = arith.index_cast %37 : i32 to index
      %c0_29 = arith.constant 0 : index
      %50 = vector.load %arg6[%49, %c0_29] : memref<48x128xf32, #tpu.memory_space<vmem>>, vector<1x2xf32>
      tpu.vector_store %arg6[%49, %c0_29], %48 {strides = array<i32>} : memref<48x128xf32, #tpu.memory_space<vmem>>, vector<1x2xf32>,
    }
    %c48_i32_21 = arith.constant 48 : i32
    return
  }
}

</mosaic_0001>

<llo_original>
// kernel: net_forward.1
$region0: #{net_forward.1}
  #allocation0 [shape = 'u32[]', space=smem, size = 0x4, offset = 0x4, fixed_abs, tag = 'smem constant byte address 0x4 - core index']
  #allocation1 [shape = 'u32[144,128]{1,0:T(1,128)}', space=vmem, size = 0x12000, scoped, tag = 'internal scratch']
  #allocation2 [shape = 'f32[32,2]{1,0:T(8,128)}', space=vmem, size = 0x4000, scoped, tag = 'scratch operand']
  %s0 = inlined_call_operand.vmem [shape: s32[2,48], index: 0, kind: input, shape index: {}]
  %s1 = inlined_call_operand.vmem [shape: bf16[32,32], index: 1, kind: input, shape index: {}]
  %s2 = inlined_call_operand.vmem [shape: bf16[32,8], index: 2, kind: input, shape index: {}]
  %s3 = inlined_call_operand.vmem [shape: bf16[8,16], index: 3, kind: input, shape index: {}]
  %s4 = inlined_call_operand.vmem [shape: bf16[16,2], index: 4, kind: input, shape index: {}]
  %s5 = inlined_call_operand.vmem [shape: f32[2,16], index: 5, kind: input, shape index: {}]
  %s6 = inlined_call_operand.vmem [shape: f32[48,128], index: 6, kind: output, shape index: {}]
  %s7 = sld [smem:[#allocation0]]
  $region45: #{net_forward.1} parent=0
    _
  %s9 = ssub.s32 1, %s7
  %s10 = scalar_select 0, %s9, %s7
  $region1: #{net_forward.1} parent=0
    #allocation3 [shape = 'u8[1024]{0}', space=smem, size = 0x400, scoped, tag = 'input window, operand 0, single buffered']
    #allocation4 [shape = 's32[1]{0}', space=sflag, size = 0x4, scoped, tag = 'scoped memory for net_forward.1']
    %11 = vsyncpa [#allocation4], 0
    // Predicated region
    $region2: #{net_forward.1} parent=1 // pred_check
      _
    $region3: #{net_forward.1} parent=1 // pred_check_branch
      %13 = sbr.rel (0) target = $region5
    $region4: #{net_forward.1} parent=1 // pred_region
      %s15 = ssub.s32 32, 32
      %16 = vsyncadd [#allocation4], %s15
      %s18 = sshll.u32 %s0, 4
      %s19 = int_to_ptr.vmem [resolvable:$true] %s18
      %21 = dma.vmem_to_smem %s19, 32, [#allocation3], [#allocation4]
    $region5: #{net_forward.1} parent=1 // pred_fallthru
      _
    // Predicated region
    $region6: #{net_forward.1} parent=1 // pred_check
      _
    $region7: #{net_forward.1} parent=1 // pred_check_branch
      %23 = sbr.rel (0) target = $region9
    $region8: #{net_forward.1} parent=1 // pred_region
      _
    $region9: #{net_forward.1} parent=1 // pred_fallthru
      _
    // Predicated region
    $region10: #{net_forward.1} parent=1 // pred_check
      _
    $region11: #{net_forward.1} parent=1 // pred_check_branch
      %25 = sbr.rel (0) target = $region13
    $region12: #{net_forward.1} parent=1 // pred_region
      _
    $region13: #{net_forward.1} parent=1 // pred_fallthru
      _
    // Predicated region
    $region14: #{net_forward.1} parent=1 // pred_check
      _
    $region15: #{net_forward.1} parent=1 // pred_check_branch
      %27 = sbr.rel (0) target = $region17
    $region16: #{net_forward.1} parent=1 // pred_region
      _
    $region17: #{net_forward.1} parent=1 // pred_fallthru
      _
    // Predicated region
    $region18: #{net_forward.1} parent=1 // pred_check
      _
    $region19: #{net_forward.1} parent=1 // pred_check_branch
      %29 = sbr.rel (0) target = $region21
    $region20: #{net_forward.1} parent=1 // pred_region
      _
    $region21: #{net_forward.1} parent=1 // pred_fallthru
      _
    // Predicated region
    $region22: #{net_forward.1} parent=1 // pred_check
      _
    $region23: #{net_forward.1} parent=1 // pred_check_branch
      %31 = sbr.rel (0) target = $region25
    $region24: #{net_forward.1} parent=1 // pred_region
      _
    $region25: #{net_forward.1} parent=1 // pred_fallthru
      _
    // Predicated region
    $region26: #{net_forward.1} parent=1 // pred_check
      _
    $region27: #{net_forward.1} parent=1 // pred_check_branch
      %33 = sbr.rel (0) target = $region29
    $region28: #{net_forward.1} parent=1 // pred_region
      %34 = dma.done [#allocation4], 32
    $region29: #{net_forward.1} parent=1 // pred_fallthru
      _
    %35 = sfence
    %v37 = vld [vmem:[%s2] sm:$0xf]
    %v38 = vld [vmem:[%s2 + $0x4] sm:$0xf]
    %v39 = vld [vmem:[%s2 + $0x8] sm:$0xf]
    %v40 = vld [vmem:[%s2 + $0xc] sm:$0xf]
    %v41 = vld [vmem:[%s3] sm:$0xf]
    %v46 = vunpack.c.l.b16 %v37
    %v47 = vunpack.c.l.b16 %v38
    %v48 = vunpack.c.l.b16 %v39
    %v49 = vunpack.c.l.b16 %v40
    %v50 = vpack.c.b16 %v47, %v46
    %v51 = vpack.c.b16 %v49, %v48
    %vm52 = vcmask 64512
    %v54 = vsel %vm52, %v50, 0
    %v57 = vsel %vm52, %v51, 0
    %vm59 = vcmask 1043456
    %v61 = vsel %vm59, %v41, 0
    %63 = vmatprep.subr.bf16.mxu0 0
    %64 = vmatpush1.bf16.msra.mxu0 0
    %65 = vmatprep.subr.bf16.mxu0 0
    %66 = vmatpush1.bf16.msra.mxu0 0
    %67 = vmatprep.subr.bf16.mxu0 0
    %68 = vmatpush1.bf16.msra.mxu0 0
    %69 = vmatprep.subr.bf16.mxu0 0
    %70 = vmatpush1.bf16.msra.mxu0 0
    %71 = vmatprep.subr.bf16.mxu0 0
    %72 = vmatpush1.bf16.msra.mxu0 0
    %73 = vmatprep.subr.bf16.mxu0 0
    %74 = vmatpush1.bf16.msra.mxu0 0
    %75 = vmatprep.subr.bf16.mxu0 0
    %76 = vmatpush1.bf16.msra.mxu0 0
    %77 = vmatprep.subr.bf16.mxu0 0
    %78 = vmatpush1.bf16.msra.mxu0 %v61
    %79 = vmatprep.subr.bf16.mxu0 0
    %80 = vmatpush2.bf16.msra.mxu0 0
    %81 = vmatprep.subr.bf16.mxu0 0
    %82 = vmatpush2.bf16.msra.mxu0 0
    %83 = vmatprep.subr.bf16.mxu0 0
    %84 = vmatpush2.bf16.msra.mxu0 0
    %85 = vmatprep.subr.bf16.mxu0 0
    %86 = vmatpush2.bf16.msra.mxu0 0
    %87 = vmatprep.subr.bf16.mxu0 0
    %88 = vmatpush2.bf16.msra.mxu0 0
    %89 = vmatprep.subr.bf16.mxu0 0
    %90 = vmatpush2.bf16.msra.mxu0 0
    %91 = vmatprep.subr.bf16.mxu0 0
    %92 = vmatpush2.bf16.msra.mxu0 0
    %93 = vmatprep.subr.bf16.mxu0 0
    %94 = vmatpush2.bf16.msra.mxu0 0
    %95 = vmatprep.mubr.bf16.mxu0 0
    %96 = vmatmul.mubr.bf16.gmra.mxu0 %v54
    %v97 = vpop.f32.mrf.mxu0
    %v98 = vadd.f32 0.0, %v97
    %v99 = vpop.f32.mrf.mxu0
    %v100 = vpop.f32.mrf.mxu0
    %v101 = vadd.f32 0.0, %v100
    %v102 = vpop.f32.mrf.mxu0
    %103 = vmatprep.mubr.bf16.mxu0 0
    %104 = vmatmul.mubr.bf16.gmra.mxu0 %v57
    %v105 = vpop.f32.mrf.mxu0
    %v106 = vadd.f32 0.0, %v105
    %v107 = vpop.f32.mrf.mxu0
    %v108 = vpop.f32.mrf.mxu0
    %v109 = vadd.f32 0.0, %v108
    %v110 = vpop.f32.mrf.mxu0
    %111 = vdwg.mxu0
    %v112 = vld [vmem:[%s1] sm:$0xf]
    %v113 = vld [vmem:[%s1 + $0x4] sm:$0xf]
    %v114 = vld [vmem:[%s1 + $0x8] sm:$0xf]
    %v115 = vld [vmem:[%s1 + $0xc] sm:$0xf]
    %v116 = vpack.c.bf16 %v101, %v98
    %v117 = vpack.c.bf16 %v109, %v106
    %v118 = vld [vmem:[%s5] sm:$0x1]
    %v119 = vlaneseq
    %v120 = vshrl.u32 %v119, 7
    %v121 = vsub.s32 0, %v120
    %v122 = vrot.slane %v118, %v121
    %v127 = vunpack.c.l.b16 %v112
    %v128 = vunpack.c.l.b16 %v113
    %v129 = vunpack.c.l.b16 %v114
    %v130 = vunpack.c.l.b16 %v115
    %v131 = vpack.c.b16 %v128, %v127
    %v132 = vpack.c.b16 %v130, %v129
    %vm133 = vcmask 261120
    %v135 = vsel %vm133, %v131, 0
    %v138 = vsel %vm133, %v132, 0
    %140 = vmatprep.subr.bf16.mxu0 0
    %141 = vmatpush1.bf16.msra.mxu0 0
    %142 = vmatprep.subr.bf16.mxu0 0
    %143 = vmatpush1.bf16.msra.mxu0 0
    %144 = vmatprep.subr.bf16.mxu0 0
    %145 = vmatpush1.bf16.msra.mxu0 0
    %146 = vmatprep.subr.bf16.mxu0 0
    %147 = vmatpush1.bf16.msra.mxu0 0
    %148 = vmatprep.subr.bf16.mxu0 0
    %149 = vmatpush1.bf16.msra.mxu0 0
    %150 = vmatprep.subr.bf16.mxu0 0
    %151 = vmatpush1.bf16.msra.mxu0 0
    %152 = vmatprep.subr.bf16.mxu0 0
    %153 = vmatpush1.bf16.msra.mxu0 %v117
    %154 = vmatprep.subr.bf16.mxu0 0
    %155 = vmatpush1.bf16.msra.mxu0 %v116
    %156 = vmatprep.subr.bf16.mxu0 0
    %157 = vmatpush2.bf16.msra.mxu0 0
    %158 = vmatprep.subr.bf16.mxu0 0
    %159 = vmatpush2.bf16.msra.mxu0 0
    %160 = vmatprep.subr.bf16.mxu0 0
    %161 = vmatpush2.bf16.msra.mxu0 0
    %162 = vmatprep.subr.bf16.mxu0 0
    %163 = vmatpush2.bf16.msra.mxu0 0
    %164 = vmatprep.subr.bf16.mxu0 0
    %165 = vmatpush2.bf16.msra.mxu0 0
    %166 = vmatprep.subr.bf16.mxu0 0
    %167 = vmatpush2.bf16.msra.mxu0 0
    %168 = vmatprep.subr.bf16.mxu0 0
    %169 = vmatpush2.bf16.msra.mxu0 0
    %170 = vmatprep.subr.bf16.mxu0 0
    %171 = vmatpush2.bf16.msra.mxu0 0
    %172 = vmatprep.mubr.bf16.mxu0 0
    %173 = vmatmul.mubr.bf16.gmra.mxu0 %v135
    %v174 = vpop.f32.mrf.mxu0
    %v175 = vadd.f32 %v122, %v174
    %v176 = vpop.f32.mrf.mxu0
    %v177 = vpop.f32.mrf.mxu0
    %v178 = vadd.f32 %v122, %v177
    %v179 = vpop.f32.mrf.mxu0
    %180 = vmatprep.mubr.bf16.mxu0 0
    %181 = vmatmul.mubr.bf16.gmra.mxu0 %v138
    %v182 = vpop.f32.mrf.mxu0
    %v183 = vadd.f32 %v122, %v182
    %v184 = vpop.f32.mrf.mxu0
    %v185 = vpop.f32.mrf.mxu0
    %v186 = vadd.f32 %v122, %v185
    %v187 = vpop.f32.mrf.mxu0
    %188 = vdwg.mxu0
    %v189 = vmax.f32 %v175, 0.0
    %v190 = vmax.f32 %v178, 0.0
    %v191 = vmax.f32 %v183, 0.0
    %v192 = vmax.f32 %v186, 0.0
    %v193 = vpack.c.bf16 %v190, %v189
    %v194 = vpack.c.bf16 %v192, %v191
    %v195 = vld [vmem:[%s4] sm:$0xf]
    %v196 = vld [vmem:[%s4 + $0x4] sm:$0xf]
    %v199 = vunpack.c.l.b16 %v195
    %v200 = vunpack.c.l.b16 %v196
    %v201 = vpack.c.b16 %v200, %v199
    %vm203 = vcmask 130048
    %v205 = vsel %vm203, %v193, 0
    %v208 = vsel %vm203, %v194, 0
    %210 = vmatprep.subr.bf16.mxu0 0
    %211 = vmatpush1.bf16.msra.mxu0 0
    %212 = vmatprep.subr.bf16.mxu0 0
    %213 = vmatpush1.bf16.msra.mxu0 0
    %214 = vmatprep.subr.bf16.mxu0 0
    %215 = vmatpush1.bf16.msra.mxu0 0
    %216 = vmatprep.subr.bf16.mxu0 0
    %217 = vmatpush1.bf16.msra.mxu0 0
    %218 = vmatprep.subr.bf16.mxu0 0
    %219 = vmatpush1.bf16.msra.mxu0 0
    %220 = vmatprep.subr.bf16.mxu0 0
    %221 = vmatpush1.bf16.msra.mxu0 0
    %222 = vmatprep.subr.bf16.mxu0 0
    %223 = vmatpush1.bf16.msra.mxu0 0
    %224 = vmatprep.subr.bf16.mxu0 0
    %225 = vmatpush1.bf16.msra.mxu0 %v201
    %226 = vmatprep.subr.bf16.mxu0 0
    %227 = vmatpush2.bf16.msra.mxu0 0
    %228 = vmatprep.subr.bf16.mxu0 0
    %229 = vmatpush2.bf16.msra.mxu0 0
    %230 = vmatprep.subr.bf16.mxu0 0
    %231 = vmatpush2.bf16.msra.mxu0 0
    %232 = vmatprep.subr.bf16.mxu0 0
    %233 = vmatpush2.bf16.msra.mxu0 0
    %234 = vmatprep.subr.bf16.mxu0 0
    %235 = vmatpush2.bf16.msra.mxu0 0
    %236 = vmatprep.subr.bf16.mxu0 0
    %237 = vmatpush2.bf16.msra.mxu0 0
    %238 = vmatprep.subr.bf16.mxu0 0
    %239 = vmatpush2.bf16.msra.mxu0 0
    %240 = vmatprep.subr.bf16.mxu0 0
    %241 = vmatpush2.bf16.msra.mxu0 0
    %242 = vmatprep.mubr.bf16.mxu0 0
    %243 = vmatmul.mubr.bf16.gmra.mxu0 %v205
    %v244 = vpop.f32.mrf.mxu0
    %v245 = vadd.f32 0.0, %v244
    %v246 = vpop.f32.mrf.mxu0
    %v247 = vpop.f32.mrf.mxu0
    %v248 = vadd.f32 0.0, %v247
    %v249 = vpop.f32.mrf.mxu0
    %250 = vmatprep.mubr.bf16.mxu0 0
    %251 = vmatmul.mubr.bf16.gmra.mxu0 %v208
    %v252 = vpop.f32.mrf.mxu0
    %v253 = vadd.f32 0.0, %v252
    %v254 = vpop.f32.mrf.mxu0
    %v255 = vpop.f32.mrf.mxu0
    %v256 = vadd.f32 0.0, %v255
    %v257 = vpop.f32.mrf.mxu0
    %258 = vdwg.mxu0
    %v259 = vpack.c.bf16 %v248, %v245
    %v260 = vpack.c.bf16 %v256, %v253
    %v261 = vld [vmem:[%s5 + $0x1] sm:$0x1]
    %v262 = vlaneseq
    %v263 = vshrl.u32 %v262, 7
    %v264 = vsub.s32 0, %v263
    %v265 = vrot.slane %v261, %v264
    %266 = vmatprep.subr.bf16.mxu0 0
    %267 = vmatpush1.bf16.msra.mxu0 0
    %268 = vmatprep.subr.bf16.mxu0 0
    %269 = vmatpush1.bf16.msra.mxu0 0
    %270 = vmatprep.subr.bf16.mxu0 0
    %271 = vmatpush1.bf16.msra.mxu0 0
    %272 = vmatprep.subr.bf16.mxu0 0
    %273 = vmatpush1.bf16.msra.mxu0 0
    %274 = vmatprep.subr.bf16.mxu0 0
    %275 = vmatpush1.bf16.msra.mxu0 0
    %276 = vmatprep.subr.bf16.mxu0 0
    %277 = vmatpush1.bf16.msra.mxu0 0
    %278 = vmatprep.subr.bf16.mxu0 0
    %279 = vmatpush1.bf16.msra.mxu0 %v260
    %280 = vmatprep.subr.bf16.mxu0 0
    %281 = vmatpush1.bf16.msra.mxu0 %v259
    %282 = vmatprep.subr.bf16.mxu0 0
    %283 = vmatpush2.bf16.msra.mxu0 0
    %284 = vmatprep.subr.bf16.mxu0 0
    %285 = vmatpush2.bf16.msra.mxu0 0
    %286 = vmatprep.subr.bf16.mxu0 0
    %287 = vmatpush2.bf16.msra.mxu0 0
    %288 = vmatprep.subr.bf16.mxu0 0
    %289 = vmatpush2.bf16.msra.mxu0 0
    %290 = vmatprep.subr.bf16.mxu0 0
    %291 = vmatpush2.bf16.msra.mxu0 0
    %292 = vmatprep.subr.bf16.mxu0 0
    %293 = vmatpush2.bf16.msra.mxu0 0
    %294 = vmatprep.subr.bf16.mxu0 0
    %295 = vmatpush2.bf16.msra.mxu0 0
    %296 = vmatprep.subr.bf16.mxu0 0
    %297 = vmatpush2.bf16.msra.mxu0 0
    %298 = vmatprep.mubr.bf16.mxu0 0
    %299 = vmatmul.mubr.bf16.gmra.mxu0 %v135
    %v300 = vpop.f32.mrf.mxu0
    %v301 = vadd.f32 %v265, %v300
    %v302 = vpop.f32.mrf.mxu0
    %v303 = vpop.f32.mrf.mxu0
    %v304 = vadd.f32 %v265, %v303
    %v305 = vpop.f32.mrf.mxu0
    %306 = vmatprep.mubr.bf16.mxu0 0
    %307 = vmatmul.mubr.bf16.gmra.mxu0 %v138
    %v308 = vpop.f32.mrf.mxu0
    %v309 = vadd.f32 %v265, %v308
    %v310 = vpop.f32.mrf.mxu0
    %v311 = vpop.f32.mrf.mxu0
    %v312 = vadd.f32 %v265, %v311
    %v313 = vpop.f32.mrf.mxu0
    %314 = vdwg.mxu0
    %319 = vrot.lane.b32.xlu0 %v301, 127
    %v320 = vpop.permute.xlu0 %319
    %321 = vrot.lane.b32.xlu0 %v304, 127
    %v322 = vpop.permute.xlu0 %321
    %323 = vrot.lane.b32.xlu0 %v309, 127
    %v324 = vpop.permute.xlu0 %323
    %325 = vrot.lane.b32.xlu0 %v312, 127
    %v326 = vpop.permute.xlu0 %325
    %v331 = vmax.f32 %v301, %v320
    %v332 = vmax.f32 %v304, %v322
    %v333 = vmax.f32 %v309, %v324
    %v334 = vmax.f32 %v312, %v326
    %v335 = vsub.f32 %v301, %v331
    %v336 = vsub.f32 %v304, %v332
    %v337 = vsub.f32 %v309, %v333
    %v338 = vsub.f32 %v312, %v334
    %v339 = vmul.f32 %v335, 1.442695
    %v340 = vpow.pop %v339
    %v341 = vmul.f32 %v336, 1.442695
    %v342 = vpow.pop %v341
    %v343 = vmul.f32 %v337, 1.442695
    %v344 = vpow.pop %v343
    %v345 = vmul.f32 %v338, 1.442695
    %v346 = vpow.pop %v345
    %351 = vrot.lane.b32.xlu0 %v331, 1
    %v352 = vpop.permute.xlu0 %351
    %353 = vrot.lane.b32.xlu0 %v332, 1
    %v354 = vpop.permute.xlu0 %353
    %355 = vrot.lane.b32.xlu0 %v333, 1
    %v356 = vpop.permute.xlu0 %355
    %357 = vrot.lane.b32.xlu0 %v334, 1
    %v358 = vpop.permute.xlu0 %357
    %v363 = vsub.f32 %v301, %v352
    %v364 = vsub.f32 %v304, %v354
    %v365 = vsub.f32 %v309, %v356
    %v366 = vsub.f32 %v312, %v358
    %v367 = vmul.f32 %v363, 1.442695
    %v368 = vpow.pop %v367
    %v369 = vmul.f32 %v364, 1.442695
    %v370 = vpow.pop %v369
    %v371 = vmul.f32 %v365, 1.442695
    %v372 = vpow.pop %v371
    %v373 = vmul.f32 %v366, 1.442695
    %v374 = vpow.pop %v373
    %379 = vrot.lane.b32.xlu0 %v368, 127
    %v380 = vpop.permute.xlu0 %379
    %381 = vrot.lane.b32.xlu0 %v370, 127
    %v382 = vpop.permute.xlu0 %381
    %383 = vrot.lane.b32.xlu0 %v372, 127
    %v384 = vpop.permute.xlu0 %383
    %385 = vrot.lane.b32.xlu0 %v374, 127
    %v386 = vpop.permute.xlu0 %385
    %v391 = vadd.f32 %v340, %v380
    %v392 = vadd.f32 %v342, %v382
    %v393 = vadd.f32 %v344, %v384
    %v394 = vadd.f32 %v346, %v386
    %v395 = vlog2.pop %v391
    %v396 = vmul.f32 %v395, 0.6931472
    %v397 = vlog2.pop %v392
    %v398 = vmul.f32 %v397, 0.6931472
    %v399 = vlog2.pop %v393
    %v400 = vmul.f32 %v399, 0.6931472
    %v401 = vlog2.pop %v394
    %v402 = vmul.f32 %v401, 0.6931472
    %v403 = vadd.f32 %v331, %v396
    %v404 = vadd.f32 %v332, %v398
    %v405 = vadd.f32 %v333, %v400
    %v406 = vadd.f32 %v334, %v402
    %408 = vset.pattern.permute.xlu0 0
    %409 = vperm.xlu0 %408, %v403
    %v410 = vpop.permute.xlu0 %409
    %413 = vset.pattern.permute.xlu0 0
    %414 = vperm.xlu0 %413, %v404
    %v415 = vpop.permute.xlu0 %414
    %418 = vset.pattern.permute.xlu0 0
    %419 = vperm.xlu0 %418, %v405
    %v420 = vpop.permute.xlu0 %419
    %423 = vset.pattern.permute.xlu0 0
    %424 = vperm.xlu0 %423, %v406
    %v425 = vpop.permute.xlu0 %424
    %v427 = vsub.f32 %v301, %v410
    %v428 = vsub.f32 %v304, %v415
    %v429 = vsub.f32 %v309, %v420
    %v430 = vsub.f32 %v312, %v425
    %vm431 = vcmask 15360
    %432 = vst.msk [vmem:[#allocation2] sm:$0xff] %vm431, %v427
    %433 = vst.msk [vmem:[#allocation2 + $0x8] sm:$0xff] %vm431, %v428
    %434 = vst.msk [vmem:[#allocation2 + $0x10] sm:$0xff] %vm431, %v429
    %435 = vst.msk [vmem:[#allocation2 + $0x18] sm:$0xff] %vm431, %v430
    %436 = vst [vmem:[%s6] sm:$0xff] 0.0
    %437 = vst [vmem:[%s6 + $0x8] sm:$0xff] 0.0
    %438 = vst [vmem:[%s6 + $0x10] sm:$0xff] 0.0
    %439 = vst [vmem:[%s6 + $0x18] sm:$0xff] 0.0
    %440 = vst [vmem:[%s6 + $0x20] sm:$0xff] 0.0
    %441 = vst [vmem:[%s6 + $0x28] sm:$0xff] 0.0
    loop: start=0, step=1, limit=48
    $region30: #{net_forward.1} parent=1 // loop_pre_header
      _
    $region31: #{net_forward.1} parent=1 // loop_header
      %s443 = sphi 0, %s447
      %p444 = scmp.ge.s32.totalorder %s443, 48
    $region32: #{net_forward.1} parent=1 // loop_header_branch
      %446 = sbr.rel (%p444) target = $region36
    $region33: #{net_forward.1} parent=1 // loop_body
      %s448 = sld [smem:[#allocation3 + %s443]]
      %s449 = sshra.s32 %s443, 7
      %s450 = sand.u32 %s443, 127
      %s451 = sadd.s32 %s449, 1
      %s452 = smul.u32 %s451, 128
      %s453 = sshra.s32 %s443, 7
      %s454 = sand.u32 %s443, 127
      %s455 = sadd.s32 %s452, %s454
      %s456 = sld [smem:[#allocation3 + %s455]]
      %s457 = scalar_lea.vmem [#allocation2], %s448
      %v458 = vld [vmem:[%s457] sm:$0x1]
      %s459 = scalar_lea.vmem [#allocation2], %s456
      %v460 = vld [vmem:[%s459] sm:$0x1]
      %v461 = vmul.f32 %v458, %v460
      %v462 = vsub.f32 0.0, %v461
      %s463 = scalar_lea.vmem %s6, %s443
      %vm464 = vcmask 8192
      %465 = vst.msk [vmem:[%s463] sm:$0x1] %vm464, %v462
    $region34: #{net_forward.1} parent=1 // loop_footer
      %s447 = sadd.s32 1, %s443
    $region35: #{net_forward.1} parent=1 // loop_footer_branch
      %442 = sbr.rel target = $region31
    $region36: #{net_forward.1} parent=1 // loop_exit
      _
    // Predicated region
    $region37: #{net_forward.1} parent=1 // pred_check
      _
    $region38: #{net_forward.1} parent=1 // pred_check_branch
      %467 = sbr.rel (0) target = $region40
    $region39: #{net_forward.1} parent=1 // pred_region
      _
    $region40: #{net_forward.1} parent=1 // pred_fallthru
      _
    // Predicated region
    $region41: #{net_forward.1} parent=1 // pred_check
      _
    $region42: #{net_forward.1} parent=1 // pred_check_branch
      %469 = sbr.rel (0) target = $region44
    $region43: #{net_forward.1} parent=1 // pred_region
      _
    $region44: #{net_forward.1} parent=1 // pred_fallthru
      _
    %470 = vsyncpa [#allocation4], 1

</llo_original>
